<compile_context>
chip_gen: v6e
topology: v6e:2x2x1
jax: 0.10.0
libtpu: 0.0.40
codegen_flags: <defaults>
</compile_context>

<pallas_src>
import functools

import jax
import jax.numpy as jnp
from jax import lax
from jax.experimental import pallas as pl
from jax.experimental.pallas import tpu as pltpu

# Module hyperparameters (fixed by the PyTorch source).
BLOCK_SIZE = 256
N_EMBD = 384
HEAD_SIZE = 64          # head_size passed to Head(head_size)
NEG_BIAS = -1e30        # finite "masked" additive bias


# ---------------------------------------------------------------------------
# Fused kernel: QKV projection + causal softmax attention for one batch item.
# ---------------------------------------------------------------------------
def _head_kernel(x_ref, wqkv_ref, bias_ref, o_ref, *, head_size, scale):
    x = x_ref[0]                 # (T, C)   bf16
    w = wqkv_ref[...]            # (C, 3H)  bf16  (resident across grid steps)

    # One wide QKV matmul on the MXU, f32 accumulation.
    qkv = jnp.dot(x, w, preferred_element_type=jnp.float32)      # (T, 3H) f32
    q = qkv[:, 0 * head_size:1 * head_size]                      # (T, H)
    k = qkv[:, 1 * head_size:2 * head_size]                      # (T, H)
    v = qkv[:, 2 * head_size:3 * head_size]                      # (T, H)

    # Scores: contract the head axis of q and k directly (q @ k^T), scaled by
    # C**-0.5 exactly like the PyTorch source (n_embd, not head_size).
    s = lax.dot_general(
        q.astype(jnp.bfloat16), k.astype(jnp.bfloat16),
        dimension_numbers=(((1,), (1,)), ((), ())),
        preferred_element_type=jnp.float32) * scale               # (T, T) f32
    s = s + bias_ref[...]        # additive causal mask (0 on/below diag, -1e30 above)

    # Numerically-stable softmax; exp + approx reciprocal run on the EUP.
    m = jnp.max(s, axis=-1, keepdims=True)
    p = jnp.exp(s - m)
    p = p * pl.reciprocal(jnp.sum(p, axis=-1, keepdims=True), approx=True)

    # Weighted sum of values (bf16 operands, f32 accumulation).
    out = jnp.dot(p.astype(jnp.bfloat16), v.astype(jnp.bfloat16),
                  preferred_element_type=jnp.float32)             # (T, H)
    o_ref[0] = out.astype(o_ref.dtype)


# ---------------------------------------------------------------------------
# Wrapper
# ---------------------------------------------------------------------------
def head_forward(x, params):
    """x: (B, T, C) float32. params['w_qkv']: (C, 3*H) bfloat16. Returns (B, T, H) f32."""
    B, T, C = x.shape
    three_h = params["w_qkv"].shape[1]
    H = three_h // 3

    x_bf16 = x.astype(jnp.bfloat16)

    # Precomputed additive causal bias (built once in XLA, loaded once into VMEM).
    row = lax.broadcasted_iota(jnp.int32, (T, T), 0)
    col = lax.broadcasted_iota(jnp.int32, (T, T), 1)
    bias = jnp.where(col <= row, 0.0, NEG_BIAS).astype(jnp.float32)

    kernel = functools.partial(_head_kernel, head_size=H, scale=C ** (-0.5))
    return pl.pallas_call(
        kernel,
        out_shape=jax.ShapeDtypeStruct((B, T, H), jnp.float32),
        grid_spec=pltpu.PrefetchScalarGridSpec(
            num_scalar_prefetch=0,
            grid=(B,),
            in_specs=[
                pl.BlockSpec((1, T, C), lambda b: (b, 0, 0)),     # x (per batch)
                pl.BlockSpec((C, three_h), lambda b: (0, 0)),     # w_qkv (resident)
                pl.BlockSpec((T, T), lambda b: (0, 0)),           # causal bias (resident)
            ],
            out_specs=pl.BlockSpec((1, T, H), lambda b: (b, 0, 0)),
        ),
        compiler_params=pltpu.CompilerParams(
            dimension_semantics=("parallel",)),
    )(x_bf16, params["w_qkv"], bias)


# ---------------------------------------------------------------------------
# Pure-JAX reference (module math; same bf16 parameter/input quantisation)
# ---------------------------------------------------------------------------
def _reference(x, params):
    B, T, C = x.shape
    w = params["w_qkv"].astype(jnp.float32)
    H = w.shape[1] // 3
    xq = x.astype(jnp.bfloat16).astype(jnp.float32)
    q = xq @ w[:, 0 * H:1 * H]
    k = xq @ w[:, 1 * H:2 * H]
    v = xq @ w[:, 2 * H:3 * H]
    s = (q @ jnp.swapaxes(k, -1, -2)) * C ** (-0.5)
    mask = jnp.tril(jnp.ones((T, T), dtype=bool))
    s = jnp.where(mask, s, -jnp.inf)
    p = jax.nn.softmax(s, axis=-1)
    # dropout(p=0.25) is identity in eval mode
    return p @ v


def init_params(key):
    ks = jax.random.split(key, 3)
    scale = N_EMBD ** -0.5
    wq = jax.random.normal(ks[0], (N_EMBD, HEAD_SIZE), jnp.float32) * scale
    wk = jax.random.normal(ks[1], (N_EMBD, HEAD_SIZE), jnp.float32) * scale
    wv = jax.random.normal(ks[2], (N_EMBD, HEAD_SIZE), jnp.float32) * scale
    # pre-transposed (in=C, out=H) and concatenated [Wq | Wk | Wv], stored bf16
    w_qkv = jnp.concatenate([wq, wk, wv], axis=1).astype(jnp.bfloat16)
    return {"w_qkv": w_qkv}


if __name__ == "__main__":
    key = jax.random.PRNGKey(0)
    pkey, xkey = jax.random.split(key)
    params = init_params(pkey)

    B, T = 2, 128  # T <= block_size (256)
    x = jax.random.normal(xkey, (B, T, N_EMBD), jnp.float32)

    out = jax.block_until_ready(head_forward(x, params))
    ref = jax.block_until_ready(_reference(x, params))

    assert out.shape == (B, T, HEAD_SIZE), out.shape
    max_err = float(jnp.max(jnp.abs(out - ref)))
    # bf16 MXU operands + approx reciprocal vs f32-ish reference -> loose tol.
    assert max_err < 2e-2, max_err
    print("KERNEL_OK")
</pallas_src>

<mosaic_0001>
module attributes {stable_mosaic.version = 11 : i64} {
  func.func @_head_kernel(%arg0: i32, %arg1: memref<1x128x384xbf16, #tpu.memory_space<vmem>>, %arg2: memref<384x192xbf16, #tpu.memory_space<vmem>>, %arg3: memref<128x128xf32, #tpu.memory_space<vmem>>, %arg4: memref<1x128x64xf32, #tpu.memory_space<vmem>>) attributes {dimension_semantics = [#tpu.dimension_semantics<parallel>], iteration_bounds = array<i64: 2>, scalar_prefetch = 0 : i64, scratch_operands = 0 : i64, tpu.core_type = #tpu.core_type<tc>, window_params = [{transform_indices = @transform_0, window_bounds = array<i64: 1, 128, 384>}, {pipeline_mode = #tpu.pipeline_mode<synchronous>, transform_indices = @transform_1, window_bounds = array<i64: 384, 192>}, {pipeline_mode = #tpu.pipeline_mode<synchronous>, transform_indices = @transform_2, window_bounds = array<i64: 128, 128>}, {transform_indices = @transform_3, window_bounds = array<i64: 1, 128, 64>}]} {
    %c0 = arith.constant 0 : index
    %c0_0 = arith.constant 0 : index
    %c0_1 = arith.constant 0 : index
    %0 = vector.load %arg1[%c0, %c0_0, %c0_1] : memref<1x128x384xbf16, #tpu.memory_space<vmem>>, vector<1x128x384xbf16>
    %1 = vector.shape_cast %0 : vector<1x128x384xbf16> to vector<128x384xbf16>
    %c0_2 = arith.constant 0 : index
    %c0_3 = arith.constant 0 : index
    %2 = vector.load %arg2[%c0_2, %c0_3] : memref<384x192xbf16, #tpu.memory_space<vmem>>, vector<384x192xbf16>
    %cst = arith.constant dense<0.000000e+00> : vector<128x192xf32>
    %3 = tpu.matmul %1, %2, %cst {dimension_numbers = #tpu.dot_dimension_numbers<[1], [0], [0], [1], [0, 0, 1, 1], [], []>} : vector<128x384xbf16>, vector<384x192xbf16>, vector<128x192xf32> -> vector<128x192xf32>
    %4 = vector.extract_strided_slice %3 {offsets = [0, 0], sizes = [128, 64], strides = [1, 1]} : vector<128x192xf32> to vector<128x64xf32>
    %5 = vector.extract_strided_slice %3 {offsets = [0, 64], sizes = [128, 64], strides = [1, 1]} : vector<128x192xf32> to vector<128x64xf32>
    %6 = vector.extract_strided_slice %3 {offsets = [0, 128], sizes = [128, 64], strides = [1, 1]} : vector<128x192xf32> to vector<128x64xf32>
    %7 = arith.truncf %4 : vector<128x64xf32> to vector<128x64xbf16>
    %8 = arith.truncf %5 : vector<128x64xf32> to vector<128x64xbf16>
    %cst_4 = arith.constant dense<0.000000e+00> : vector<128x128xf32>
    %9 = tpu.matmul %7, %8, %cst_4 {dimension_numbers = #tpu.dot_dimension_numbers<[1], [1], [0], [0], [0, 0, 1, 0], [], []>} : vector<128x64xbf16>, vector<128x64xbf16>, vector<128x128xf32> -> vector<128x128xf32>
    %cst_5 = arith.constant 0.0510310382 : f32
    %10 = vector.broadcast %cst_5 : f32 to vector<128x128xf32>
    %11 = arith.mulf %9, %10 : vector<128x128xf32>
    %c0_6 = arith.constant 0 : index
    %c0_7 = arith.constant 0 : index
    %12 = vector.load %arg3[%c0_6, %c0_7] : memref<128x128xf32, #tpu.memory_space<vmem>>, vector<128x128xf32>
    %13 = arith.addf %11, %12 : vector<128x128xf32>
    %cst_8 = arith.constant dense<0xFF800000> : vector<128xf32>
    %14 = vector.multi_reduction <maximumf>, %13, %cst_8 [1] : vector<128x128xf32> to vector<128xf32>
    %15 = vector.shape_cast %14 : vector<128xf32> to vector<128x1xf32>
    %16 = vector.broadcast %15 : vector<128x1xf32> to vector<128x128xf32>
    %17 = arith.subf %13, %16 : vector<128x128xf32>
    %18 = math.exp %17 : vector<128x128xf32>
    %cst_9 = arith.constant dense<0.000000e+00> : vector<128xf32>
    %19 = vector.multi_reduction <add>, %18, %cst_9 [1] : vector<128x128xf32> to vector<128xf32>
    %20 = vector.shape_cast %19 : vector<128xf32> to vector<128x1xf32>
    %21 = tpu.reciprocal %20 {approx = true} : vector<128x1xf32> -> vector<128x1xf32>
    %22 = vector.broadcast %21 : vector<128x1xf32> to vector<128x128xf32>
    %23 = arith.mulf %18, %22 : vector<128x128xf32>
    %24 = arith.truncf %23 : vector<128x128xf32> to vector<128x128xbf16>
    %25 = arith.truncf %6 : vector<128x64xf32> to vector<128x64xbf16>
    %cst_10 = arith.constant dense<0.000000e+00> : vector<128x64xf32>
    %26 = tpu.matmul %24, %25, %cst_10 {dimension_numbers = #tpu.dot_dimension_numbers<[1], [0], [0], [1], [0, 0, 1, 1], [], []>} : vector<128x128xbf16>, vector<128x64xbf16>, vector<128x64xf32> -> vector<128x64xf32>
    %c0_11 = arith.constant 0 : index
    %c0_12 = arith.constant 0 : index
    %c0_13 = arith.constant 0 : index
    %27 = vector.load %arg4[%c0_11, %c0_12, %c0_13] : memref<1x128x64xf32, #tpu.memory_space<vmem>>, vector<1x128x64xf32>
    %28 = vector.shape_cast %27 : vector<1x128x64xf32> to vector<128x64xf32>
    %29 = vector.shape_cast %26 : vector<128x64xf32> to vector<1x128x64xf32>
    tpu.vector_store %arg4[%c0_11, %c0_12, %c0_13], %29 {strides = array<i32>} : memref<1x128x64xf32, #tpu.memory_space<vmem>>, vector<1x128x64xf32>,
    return
  }
  func.func @transform_0(%arg0: i32) -> (i32, i32, i32) {
    %c0_i32 = arith.constant 0 : i32
    %c0_i32_0 = arith.constant 0 : i32
    %c0_i32_1 = arith.constant 0 : i32
    return %arg0, %c0_i32, %c0_i32_0 : i32, i32, i32
  }
  func.func @transform_1(%arg0: i32) -> (i32, i32) {
    %c0_i32 = arith.constant 0 : i32
    %c0_i32_0 = arith.constant 0 : i32
    %c0_i32_1 = arith.constant 0 : i32
    return %c0_i32, %c0_i32_0 : i32, i32
  }
  func.func @transform_2(%arg0: i32) -> (i32, i32) {
    %c0_i32 = arith.constant 0 : i32
    %c0_i32_0 = arith.constant 0 : i32
    %c0_i32_1 = arith.constant 0 : i32
    return %c0_i32, %c0_i32_0 : i32, i32
  }
  func.func @transform_3(%arg0: i32) -> (i32, i32, i32) {
    %c0_i32 = arith.constant 0 : i32
    %c0_i32_0 = arith.constant 0 : i32
    %c0_i32_1 = arith.constant 0 : i32
    return %arg0, %c0_i32, %c0_i32_0 : i32, i32, i32
  }
}

</mosaic_0001>

<llo_original>
// kernel: tpu_custom_call.1
$region0: #{tpu_custom_call.1}
  #allocation0 [shape = 'u32[]', space=smem, size = 0x4, offset = 0x4, fixed_abs, tag = 'smem constant byte address 0x4 - core index']
  #allocation1 [shape = 'u32[144,128]{1,0:T(1,128)}', space=vmem, size = 0x12000, scoped, tag = 'internal scratch']
  %s0 = inlined_call_operand.vmem [shape: bf16[2,128,384], index: 0, kind: input, shape index: {}]
  %s1 = inlined_call_operand.vmem [shape: bf16[384,192], index: 1, kind: input, shape index: {}]
  %s2 = inlined_call_operand.vmem [shape: f32[128,128], index: 2, kind: input, shape index: {}]
  %s3 = inlined_call_operand.vmem [shape: f32[2,128,64], index: 3, kind: output, shape index: {}]
  %s4 = sld [smem:[#allocation0]]
  $region45: #{tpu_custom_call.1} parent=0
    _
  %s6 = ssub.s32 1, %s4
  %s7 = scalar_select 0, %s6, %s4
  loop: start=0, step=1, limit=4
  $region2: #{tpu_custom_call.1} parent=0 // loop_pre_header
    _
  $region3: #{tpu_custom_call.1} parent=0 // loop_header
    %s9 = sphi 0, %s13
    %p10 = scmp.ge.s32.totalorder %s9, 4
    %s19 = sphi 0, %s21
    %s22 = sphi 0, %s19
    %s23 = sphi 0, %s22
    %s39 = sphi 0, %s23
    %s43 = sphi 0, %s43
    %s45 = sphi 0, %s43
    %s46 = sphi 0, %s45
    %s60 = sphi 0, %s46
    %s64 = sphi 0, %s64
    %s66 = sphi 0, %s64
    %s67 = sphi 0, %s66
    %s81 = sphi 0, %s67
    %s87 = sphi 0, %s89
    %s90 = sphi 0, %s87
    %s91 = sphi 0, %s90
    %s107 = sphi 0, %s91
  $region4: #{tpu_custom_call.1} parent=0 // loop_header_branch
    %12 = sbr.rel (%p10) target = $region8
  $region5: #{tpu_custom_call.1} parent=0 // loop_body
    %s14 = ssub.s32 %s9, 1
    %s15 = ssub.s32 %s9, 2
    %s16 = sadd.s32 %s9, 1
    %s17 = ssub.s32 %s9, %s16
    %p18 = scmp.eq.s32.totalorder %s17, 0
    %s20 = sadd.s32 %s19, 1
    %s21 = scalar_select %p18, %s19, %s20
    %p24 = pneg %p18
    %p25 = scmp.eq.s32.totalorder %s9, 1
    %p26 = por %p24, %p25
    %p27 = scmp.ne.s32.totalorder %s19, %s22
    %p28 = scmp.eq.s32.totalorder %s9, 0
    %p29 = por %p27, %p28
    %p30 = scmp.ne.s32.totalorder %s19, %s22
    %p31 = scmp.eq.s32.totalorder %s14, 1
    %p32 = por %p30, %p31
    %p33 = scmp.ne.s32.totalorder %s22, %s23
    %p34 = scmp.eq.s32.totalorder %s14, 0
    %p35 = por %p33, %p34
    %p36 = scmp.ne.s32.totalorder %s22, %s23
    %p37 = scmp.eq.s32.totalorder %s15, 1
    %p38 = por %p36, %p37
    %p40 = scmp.ne.s32.totalorder %s23, %s39
    %p41 = scmp.eq.s32.totalorder %s15, 0
    %p42 = por %p40, %p41
    %s44 = sadd.s32 %s43, 1
    %p47 = scmp.eq.s32.totalorder %s9, 1
    %p48 = scmp.ne.s32.totalorder %s43, %s45
    %p49 = scmp.eq.s32.totalorder %s9, 0
    %p50 = por %p48, %p49
    %p51 = scmp.ne.s32.totalorder %s43, %s45
    %p52 = scmp.eq.s32.totalorder %s14, 1
    %p53 = por %p51, %p52
    %p54 = scmp.ne.s32.totalorder %s45, %s46
    %p55 = scmp.eq.s32.totalorder %s14, 0
    %p56 = por %p54, %p55
    %p57 = scmp.ne.s32.totalorder %s45, %s46
    %p58 = scmp.eq.s32.totalorder %s15, 1
    %p59 = por %p57, %p58
    %p61 = scmp.ne.s32.totalorder %s46, %s60
    %p62 = scmp.eq.s32.totalorder %s15, 0
    %p63 = por %p61, %p62
    %s65 = sadd.s32 %s64, 1
    %p68 = scmp.eq.s32.totalorder %s9, 1
    %p69 = scmp.ne.s32.totalorder %s64, %s66
    %p70 = scmp.eq.s32.totalorder %s9, 0
    %p71 = por %p69, %p70
    %p72 = scmp.ne.s32.totalorder %s64, %s66
    %p73 = scmp.eq.s32.totalorder %s14, 1
    %p74 = por %p72, %p73
    %p75 = scmp.ne.s32.totalorder %s66, %s67
    %p76 = scmp.eq.s32.totalorder %s14, 0
    %p77 = por %p75, %p76
    %p78 = scmp.ne.s32.totalorder %s66, %s67
    %p79 = scmp.eq.s32.totalorder %s15, 1
    %p80 = por %p78, %p79
    %p82 = scmp.ne.s32.totalorder %s67, %s81
    %p83 = scmp.eq.s32.totalorder %s15, 0
    %p84 = por %p82, %p83
    %s85 = ssub.s32 %s9, %s16
    %p86 = scmp.eq.s32.totalorder %s85, 0
    %s88 = sadd.s32 %s87, 1
    %s89 = scalar_select %p86, %s87, %s88
    %p92 = pneg %p86
    %p93 = scmp.eq.s32.totalorder %s9, 1
    %p94 = por %p92, %p93
    %p95 = scmp.ne.s32.totalorder %s87, %s90
    %p96 = scmp.eq.s32.totalorder %s9, 0
    %p97 = por %p95, %p96
    %p98 = scmp.ne.s32.totalorder %s87, %s90
    %p99 = scmp.eq.s32.totalorder %s14, 1
    %p100 = por %p98, %p99
    %p101 = scmp.ne.s32.totalorder %s90, %s91
    %p102 = scmp.eq.s32.totalorder %s14, 0
    %p103 = por %p101, %p102
    %p104 = scmp.ne.s32.totalorder %s90, %s91
    %p105 = scmp.eq.s32.totalorder %s15, 1
    %p106 = por %p104, %p105
    %p108 = scmp.ne.s32.totalorder %s91, %s107
    %p109 = scmp.eq.s32.totalorder %s15, 0
    %p110 = por %p108, %p109
    %p111 = scmp.le.s32.totalorder 1, %s9
    %p112 = scmp.lt.s32.totalorder %s9, 3
    %p113 = pnand %p111, %p112
    %p114 = pneg %p113
    // Predicated region
    $region9: #{tpu_custom_call.1} parent=5 // pred_check
      _
    $region10: #{tpu_custom_call.1} parent=5 // pred_check_branch
      %116 = sbr.rel (%p113) target = $region12
    $region11: #{tpu_custom_call.1} parent=5 // pred_region
      %s117 = ssub.s32 %s9, 1
      // Predicated region
      $region13: #{tpu_custom_call.1} parent=11 // pred_check
        %p118 = pneg %p56
      $region14: #{tpu_custom_call.1} parent=11 // pred_check_branch
        %120 = sbr.rel (%p118) target = $region16
      $region15: #{tpu_custom_call.1} parent=11 // pred_region
        _
      $region16: #{tpu_custom_call.1} parent=11 // pred_fallthru
        _
      // Predicated region
      $region17: #{tpu_custom_call.1} parent=11 // pred_check
        %p121 = pneg %p77
      $region18: #{tpu_custom_call.1} parent=11 // pred_check_branch
        %123 = sbr.rel (%p121) target = $region20
      $region19: #{tpu_custom_call.1} parent=11 // pred_region
        _
      $region20: #{tpu_custom_call.1} parent=11 // pred_fallthru
        _
    $region12: #{tpu_custom_call.1} parent=5 // pred_fallthru
      _
    %p124 = scmp.lt.s32.totalorder %s9, 2
    // Predicated region
    $region21: #{tpu_custom_call.1} parent=5 // pred_check
      %p125 = pneg %p124
    $region22: #{tpu_custom_call.1} parent=5 // pred_check_branch
      %127 = sbr.rel (%p125) target = $region24
    $region23: #{tpu_custom_call.1} parent=5 // pred_region
      // Predicated region
      $region25: #{tpu_custom_call.1} parent=23 // pred_check
        %p128 = pneg %p29
      $region26: #{tpu_custom_call.1} parent=23 // pred_check_branch
        %130 = sbr.rel (%p128) target = $region28
      $region27: #{tpu_custom_call.1} parent=23 // pred_region
        %p131 = scmp.lt.s32.totalorder %s9, 1
        %s132 = scalar_select %p131, %s9, 1
        %s133 = smul.addr %s132, 48
        %s134 = smul.addr %s133, 4
        %s135 = scalar_lea.vmem %s0, %s134
      $region28: #{tpu_custom_call.1} parent=23 // pred_fallthru
        _
    $region24: #{tpu_custom_call.1} parent=5 // pred_fallthru
      _
    %p136 = scmp.le.s32.totalorder 1, %s9
    %p137 = scmp.lt.s32.totalorder %s9, 3
    %p138 = pnand %p136, %p137
    %p139 = pneg %p138
    // Predicated region
    $region29: #{tpu_custom_call.1} parent=5 // pred_check
      _
    $region30: #{tpu_custom_call.1} parent=5 // pred_check_branch
      %141 = sbr.rel (%p138) target = $region32
    $region31: #{tpu_custom_call.1} parent=5 // pred_region
      %s142 = ssub.s32 %s9, 1
      %p143 = scmp.lt.s32.totalorder %s14, 1
      %s144 = scalar_select %p143, %s14, 1
      %s145 = smul.addr %s144, 48
      %s146 = smul.addr %s145, 4
      %s147 = scalar_lea.vmem %s0, %s146
      %p148 = pneg %p35
      %p149 = pneg %p32
      %p150 = pneg %p56
      %p151 = pneg %p53
      %p152 = pneg %p77
      %p153 = pneg %p74
      %p154 = pneg %p103
      %p155 = pneg %p100
      %p156 = scmp.lt.s32.totalorder %s14, 1
      %s157 = scalar_select %p156, %s14, 1
      %s158 = smul.addr %s157, 16
      %s159 = smul.addr %s158, 8
      %s160 = scalar_lea.vmem %s3, %s159
      %p161 = scmp.lt.s32.totalorder %s14, 1
      %s162 = scalar_select %p161, %s14, 1
      %s163 = smul.addr %s162, 48
      %s164 = smul.addr %s163, 4
      %s165 = scalar_lea.vmem %s0, %s164
      %p166 = scmp.lt.s32.totalorder %s14, 1
      %s167 = scalar_select %p166, %s14, 1
      %s168 = smul.addr %s167, 16
      %s169 = smul.addr %s168, 8
      %s170 = scalar_lea.vmem %s3, %s169
      %v172 = vld [vmem:[%s165] sm:$0xff]
      %v173 = vld [vmem:[%s165 + $0x8] sm:$0xf]
      %v174 = vld [vmem:[%s165 + $0xc] sm:$0xff]
      %v175 = vld [vmem:[%s165 + $0x14] sm:$0xf]
      %v176 = vld [vmem:[%s165 + $0x18] sm:$0xff]
      %v177 = vld [vmem:[%s165 + $0x20] sm:$0xf]
      %v178 = vld [vmem:[%s165 + $0x24] sm:$0xff]
      %v179 = vld [vmem:[%s165 + $0x2c] sm:$0xf]
      %v180 = vld [vmem:[%s165 + $0x30] sm:$0xff]
      %v181 = vld [vmem:[%s165 + $0x38] sm:$0xf]
      %v182 = vld [vmem:[%s165 + $0x3c] sm:$0xff]
      %v183 = vld [vmem:[%s165 + $0x44] sm:$0xf]
      %v184 = vld [vmem:[%s165 + $0x48] sm:$0xff]
      %v185 = vld [vmem:[%s165 + $0x50] sm:$0xf]
      %v186 = vld [vmem:[%s165 + $0x54] sm:$0xff]
      %v187 = vld [vmem:[%s165 + $0x5c] sm:$0xf]
      %v188 = vld [vmem:[%s165 + $0x60] sm:$0xff]
      %v189 = vld [vmem:[%s165 + $0x68] sm:$0xf]
      %v190 = vld [vmem:[%s165 + $0x6c] sm:$0xff]
      %v191 = vld [vmem:[%s165 + $0x74] sm:$0xf]
      %v192 = vld [vmem:[%s165 + $0x78] sm:$0xff]
      %v193 = vld [vmem:[%s165 + $0x80] sm:$0xf]
      %v194 = vld [vmem:[%s165 + $0x84] sm:$0xff]
      %v195 = vld [vmem:[%s165 + $0x8c] sm:$0xf]
      %v196 = vld [vmem:[%s165 + $0x90] sm:$0xff]
      %v197 = vld [vmem:[%s165 + $0x98] sm:$0xf]
      %v198 = vld [vmem:[%s165 + $0x9c] sm:$0xff]
      %v199 = vld [vmem:[%s165 + $0xa4] sm:$0xf]
      %v200 = vld [vmem:[%s165 + $0xa8] sm:$0xff]
      %v201 = vld [vmem:[%s165 + $0xb0] sm:$0xf]
      %v202 = vld [vmem:[%s165 + $0xb4] sm:$0xff]
      %v203 = vld [vmem:[%s165 + $0xbc] sm:$0xf]
      %v204 = vld [vmem:[%s1] sm:$0xff]
      %v205 = vld [vmem:[%s1 + $0x8] sm:$0xff]
      %v206 = vld [vmem:[%s1 + $0x10] sm:$0xff]
      %v207 = vld [vmem:[%s1 + $0x18] sm:$0xff]
      %v208 = vld [vmem:[%s1 + $0x20] sm:$0xff]
      %v209 = vld [vmem:[%s1 + $0x28] sm:$0xff]
      %v210 = vld [vmem:[%s1 + $0x30] sm:$0xff]
      %v211 = vld [vmem:[%s1 + $0x38] sm:$0xff]
      %v212 = vld [vmem:[%s1 + $0x40] sm:$0xff]
      %v213 = vld [vmem:[%s1 + $0x48] sm:$0xff]
      %v214 = vld [vmem:[%s1 + $0x50] sm:$0xff]
      %v215 = vld [vmem:[%s1 + $0x58] sm:$0xff]
      %v216 = vld [vmem:[%s1 + $0x60] sm:$0xff]
      %v217 = vld [vmem:[%s1 + $0x68] sm:$0xff]
      %v218 = vld [vmem:[%s1 + $0x70] sm:$0xff]
      %v219 = vld [vmem:[%s1 + $0x78] sm:$0xff]
      %v220 = vld [vmem:[%s1 + $0x80] sm:$0xff]
      %v221 = vld [vmem:[%s1 + $0x88] sm:$0xff]
      %v222 = vld [vmem:[%s1 + $0x90] sm:$0xff]
      %v223 = vld [vmem:[%s1 + $0x98] sm:$0xff]
      %v224 = vld [vmem:[%s1 + $0xa0] sm:$0xff]
      %v225 = vld [vmem:[%s1 + $0xa8] sm:$0xff]
      %v226 = vld [vmem:[%s1 + $0xb0] sm:$0xff]
      %v227 = vld [vmem:[%s1 + $0xb8] sm:$0xff]
      %v228 = vld [vmem:[%s1 + $0xc0] sm:$0xff]
      %v229 = vld [vmem:[%s1 + $0xc8] sm:$0xff]
      %v230 = vld [vmem:[%s1 + $0xd0] sm:$0xff]
      %v231 = vld [vmem:[%s1 + $0xd8] sm:$0xff]
      %v232 = vld [vmem:[%s1 + $0xe0] sm:$0xff]
      %v233 = vld [vmem:[%s1 + $0xe8] sm:$0xff]
      %v234 = vld [vmem:[%s1 + $0xf0] sm:$0xff]
      %v235 = vld [vmem:[%s1 + $0xf8] sm:$0xff]
      %v236 = vld [vmem:[%s1 + $0x100] sm:$0xff]
      %v237 = vld [vmem:[%s1 + $0x108] sm:$0xff]
      %v238 = vld [vmem:[%s1 + $0x110] sm:$0xff]
      %v239 = vld [vmem:[%s1 + $0x118] sm:$0xff]
      %v240 = vld [vmem:[%s1 + $0x120] sm:$0xff]
      %v241 = vld [vmem:[%s1 + $0x128] sm:$0xff]
      %v242 = vld [vmem:[%s1 + $0x130] sm:$0xff]
      %v243 = vld [vmem:[%s1 + $0x138] sm:$0xff]
      %v244 = vld [vmem:[%s1 + $0x140] sm:$0xff]
      %v245 = vld [vmem:[%s1 + $0x148] sm:$0xff]
      %v246 = vld [vmem:[%s1 + $0x150] sm:$0xff]
      %v247 = vld [vmem:[%s1 + $0x158] sm:$0xff]
      %v248 = vld [vmem:[%s1 + $0x160] sm:$0xff]
      %v249 = vld [vmem:[%s1 + $0x168] sm:$0xff]
      %v250 = vld [vmem:[%s1 + $0x170] sm:$0xff]
      %v251 = vld [vmem:[%s1 + $0x178] sm:$0xff]
      %v284 = vunpack.c.l.b16 %v172
      %v285 = vunpack.c.h.b16 %v172
      %v286 = vunpack.c.l.b16 %v173
      %v287 = vunpack.c.l.b16 %v174
      %v288 = vunpack.c.h.b16 %v174
      %v289 = vunpack.c.l.b16 %v175
      %v290 = vunpack.c.l.b16 %v176
      %v291 = vunpack.c.h.b16 %v176
      %v292 = vunpack.c.l.b16 %v177
      %v293 = vunpack.c.l.b16 %v178
      %v294 = vunpack.c.h.b16 %v178
      %v295 = vunpack.c.l.b16 %v179
      %v296 = vunpack.c.l.b16 %v180
      %v297 = vunpack.c.h.b16 %v180
      %v298 = vunpack.c.l.b16 %v181
      %v299 = vunpack.c.l.b16 %v182
      %v300 = vunpack.c.h.b16 %v182
      %v301 = vunpack.c.l.b16 %v183
      %v302 = vunpack.c.l.b16 %v184
      %v303 = vunpack.c.h.b16 %v184
      %v304 = vunpack.c.l.b16 %v185
      %v305 = vunpack.c.l.b16 %v186
      %v306 = vunpack.c.h.b16 %v186
      %v307 = vunpack.c.l.b16 %v187
      %v308 = vunpack.c.l.b16 %v188
      %v309 = vunpack.c.h.b16 %v188
      %v310 = vunpack.c.l.b16 %v189
      %v311 = vunpack.c.l.b16 %v190
      %v312 = vunpack.c.h.b16 %v190
      %v313 = vunpack.c.l.b16 %v191
      %v314 = vunpack.c.l.b16 %v192
      %v315 = vunpack.c.h.b16 %v192
      %v316 = vunpack.c.l.b16 %v193
      %v317 = vunpack.c.l.b16 %v194
      %v318 = vunpack.c.h.b16 %v194
      %v319 = vunpack.c.l.b16 %v195
      %v320 = vunpack.c.l.b16 %v196
      %v321 = vunpack.c.h.b16 %v196
      %v322 = vunpack.c.l.b16 %v197
      %v323 = vunpack.c.l.b16 %v198
      %v324 = vunpack.c.h.b16 %v198
      %v325 = vunpack.c.l.b16 %v199
      %v326 = vunpack.c.l.b16 %v200
      %v327 = vunpack.c.h.b16 %v200
      %v328 = vunpack.c.l.b16 %v201
      %v329 = vunpack.c.l.b16 %v202
      %v330 = vunpack.c.h.b16 %v202
      %v331 = vunpack.c.l.b16 %v203
      %v332 = vpack.c.b16 %v287, %v284
      %v333 = vpack.c.b16 %v288, %v285
      %v334 = vpack.c.b16 %v289, %v286
      %v335 = vpack.c.b16 %v293, %v290
      %v336 = vpack.c.b16 %v294, %v291
      %v337 = vpack.c.b16 %v295, %v292
      %v338 = vpack.c.b16 %v299, %v296
      %v339 = vpack.c.b16 %v300, %v297
      %v340 = vpack.c.b16 %v301, %v298
      %v341 = vpack.c.b16 %v305, %v302
      %v342 = vpack.c.b16 %v306, %v303
      %v343 = vpack.c.b16 %v307, %v304
      %v344 = vpack.c.b16 %v311, %v308
      %v345 = vpack.c.b16 %v312, %v309
      %v346 = vpack.c.b16 %v313, %v310
      %v347 = vpack.c.b16 %v317, %v314
      %v348 = vpack.c.b16 %v318, %v315
      %v349 = vpack.c.b16 %v319, %v316
      %v350 = vpack.c.b16 %v323, %v320
      %v351 = vpack.c.b16 %v324, %v321
      %v352 = vpack.c.b16 %v325, %v322
      %v353 = vpack.c.b16 %v329, %v326
      %v354 = vpack.c.b16 %v330, %v327
      %v355 = vpack.c.b16 %v331, %v328
      %v428 = vunpack.c.l.b16 %v204
      %v429 = vunpack.c.h.b16 %v204
      %v430 = vunpack.c.l.b16 %v205
      %v431 = vunpack.c.h.b16 %v205
      %v432 = vunpack.c.l.b16 %v206
      %v433 = vunpack.c.h.b16 %v206
      %v434 = vunpack.c.l.b16 %v207
      %v435 = vunpack.c.h.b16 %v207
      %v436 = vunpack.c.l.b16 %v208
      %v437 = vunpack.c.h.b16 %v208
      %v438 = vunpack.c.l.b16 %v209
      %v439 = vunpack.c.h.b16 %v209
      %v440 = vunpack.c.l.b16 %v210
      %v441 = vunpack.c.h.b16 %v210
      %v442 = vunpack.c.l.b16 %v211
      %v443 = vunpack.c.h.b16 %v211
      %v444 = vunpack.c.l.b16 %v212
      %v445 = vunpack.c.h.b16 %v212
      %v446 = vunpack.c.l.b16 %v213
      %v447 = vunpack.c.h.b16 %v213
      %v448 = vunpack.c.l.b16 %v214
      %v449 = vunpack.c.h.b16 %v214
      %v450 = vunpack.c.l.b16 %v215
      %v451 = vunpack.c.h.b16 %v215
      %v452 = vunpack.c.l.b16 %v216
      %v453 = vunpack.c.h.b16 %v216
      %v454 = vunpack.c.l.b16 %v217
      %v455 = vunpack.c.h.b16 %v217
      %v456 = vunpack.c.l.b16 %v218
      %v457 = vunpack.c.h.b16 %v218
      %v458 = vunpack.c.l.b16 %v219
      %v459 = vunpack.c.h.b16 %v219
      %v460 = vunpack.c.l.b16 %v220
      %v461 = vunpack.c.h.b16 %v220
      %v462 = vunpack.c.l.b16 %v221
      %v463 = vunpack.c.h.b16 %v221
      %v464 = vunpack.c.l.b16 %v222
      %v465 = vunpack.c.h.b16 %v222
      %v466 = vunpack.c.l.b16 %v223
      %v467 = vunpack.c.h.b16 %v223
      %v468 = vunpack.c.l.b16 %v224
      %v469 = vunpack.c.h.b16 %v224
      %v470 = vunpack.c.l.b16 %v225
      %v471 = vunpack.c.h.b16 %v225
      %v472 = vunpack.c.l.b16 %v226
      %v473 = vunpack.c.h.b16 %v226
      %v474 = vunpack.c.l.b16 %v227
      %v475 = vunpack.c.h.b16 %v227
      %v476 = vunpack.c.l.b16 %v228
      %v477 = vunpack.c.h.b16 %v228
      %v478 = vunpack.c.l.b16 %v229
      %v479 = vunpack.c.h.b16 %v229
      %v480 = vunpack.c.l.b16 %v230
      %v481 = vunpack.c.h.b16 %v230
      %v482 = vunpack.c.l.b16 %v231
      %v483 = vunpack.c.h.b16 %v231
      %v484 = vunpack.c.l.b16 %v232
      %v485 = vunpack.c.h.b16 %v232
      %v486 = vunpack.c.l.b16 %v233
      %v487 = vunpack.c.h.b16 %v233
      %v488 = vunpack.c.l.b16 %v234
      %v489 = vunpack.c.h.b16 %v234
      %v490 = vunpack.c.l.b16 %v235
      %v491 = vunpack.c.h.b16 %v235
      %v492 = vunpack.c.l.b16 %v236
      %v493 = vunpack.c.h.b16 %v236
      %v494 = vunpack.c.l.b16 %v237
      %v495 = vunpack.c.h.b16 %v237
      %v496 = vunpack.c.l.b16 %v238
      %v497 = vunpack.c.h.b16 %v238
      %v498 = vunpack.c.l.b16 %v239
      %v499 = vunpack.c.h.b16 %v239
      %v500 = vunpack.c.l.b16 %v240
      %v501 = vunpack.c.h.b16 %v240
      %v502 = vunpack.c.l.b16 %v241
      %v503 = vunpack.c.h.b16 %v241
      %v504 = vunpack.c.l.b16 %v242
      %v505 = vunpack.c.h.b16 %v242
      %v506 = vunpack.c.l.b16 %v243
      %v507 = vunpack.c.h.b16 %v243
      %v508 = vunpack.c.l.b16 %v244
      %v509 = vunpack.c.h.b16 %v244
      %v510 = vunpack.c.l.b16 %v245
      %v511 = vunpack.c.h.b16 %v245
      %v512 = vunpack.c.l.b16 %v246
      %v513 = vunpack.c.h.b16 %v246
      %v514 = vunpack.c.l.b16 %v247
      %v515 = vunpack.c.h.b16 %v247
      %v516 = vunpack.c.l.b16 %v248
      %v517 = vunpack.c.h.b16 %v248
      %v518 = vunpack.c.l.b16 %v249
      %v519 = vunpack.c.h.b16 %v249
      %v520 = vunpack.c.l.b16 %v250
      %v521 = vunpack.c.h.b16 %v250
      %v522 = vunpack.c.l.b16 %v251
      %v523 = vunpack.c.h.b16 %v251
      %v524 = vpack.c.b16 %v430, %v428
      %v525 = vpack.c.b16 %v431, %v429
      %v526 = vpack.c.b16 %v434, %v432
      %v527 = vpack.c.b16 %v435, %v433
      %v528 = vpack.c.b16 %v438, %v436
      %v529 = vpack.c.b16 %v439, %v437
      %v530 = vpack.c.b16 %v442, %v440
      %v531 = vpack.c.b16 %v443, %v441
      %v532 = vpack.c.b16 %v446, %v444
      %v533 = vpack.c.b16 %v447, %v445
      %v534 = vpack.c.b16 %v450, %v448
      %v535 = vpack.c.b16 %v451, %v449
      %v536 = vpack.c.b16 %v454, %v452
      %v537 = vpack.c.b16 %v455, %v453
      %v538 = vpack.c.b16 %v458, %v456
      %v539 = vpack.c.b16 %v459, %v457
      %v540 = vpack.c.b16 %v462, %v460
      %v541 = vpack.c.b16 %v463, %v461
      %v542 = vpack.c.b16 %v466, %v464
      %v543 = vpack.c.b16 %v467, %v465
      %v544 = vpack.c.b16 %v470, %v468
      %v545 = vpack.c.b16 %v471, %v469
      %v546 = vpack.c.b16 %v474, %v472
      %v547 = vpack.c.b16 %v475, %v473
      %v548 = vpack.c.b16 %v478, %v476
      %v549 = vpack.c.b16 %v479, %v477
      %v550 = vpack.c.b16 %v482, %v480
      %v551 = vpack.c.b16 %v483, %v481
      %v552 = vpack.c.b16 %v486, %v484
      %v553 = vpack.c.b16 %v487, %v485
      %v554 = vpack.c.b16 %v490, %v488
      %v555 = vpack.c.b16 %v491, %v489
      %v556 = vpack.c.b16 %v494, %v492
      %v557 = vpack.c.b16 %v495, %v493
      %v558 = vpack.c.b16 %v498, %v496
      %v559 = vpack.c.b16 %v499, %v497
      %v560 = vpack.c.b16 %v502, %v500
      %v561 = vpack.c.b16 %v503, %v501
      %v562 = vpack.c.b16 %v506, %v504
      %v563 = vpack.c.b16 %v507, %v505
      %v564 = vpack.c.b16 %v510, %v508
      %v565 = vpack.c.b16 %v511, %v509
      %v566 = vpack.c.b16 %v514, %v512
      %v567 = vpack.c.b16 %v515, %v513
      %v568 = vpack.c.b16 %v518, %v516
      %v569 = vpack.c.b16 %v519, %v517
      %v570 = vpack.c.b16 %v522, %v520
      %v571 = vpack.c.b16 %v523, %v521
      %620 = vmatprep.subr.bf16.mxu0 %v539
      %621 = vmatpush1.bf16.msra.mxu0 %v538
      %622 = vmatprep.subr.bf16.mxu0 %v537
      %623 = vmatpush1.bf16.msra.mxu0 %v536
      %624 = vmatprep.subr.bf16.mxu0 %v535
      %625 = vmatpush1.bf16.msra.mxu0 %v534
      %626 = vmatprep.subr.bf16.mxu0 %v533
      %627 = vmatpush1.bf16.msra.mxu0 %v532
      %628 = vmatprep.subr.bf16.mxu0 %v531
      %629 = vmatpush1.bf16.msra.mxu0 %v530
      %630 = vmatprep.subr.bf16.mxu0 %v529
      %631 = vmatpush1.bf16.msra.mxu0 %v528
      %632 = vmatprep.subr.bf16.mxu0 %v527
      %633 = vmatpush1.bf16.msra.mxu0 %v526
      %634 = vmatprep.subr.bf16.mxu0 %v525
      %635 = vmatpush1.bf16.msra.mxu0 %v524
      %636 = vmatprep.subr.bf16.mxu0 %v555
      %637 = vmatpush2.bf16.msra.mxu0 %v554
      %638 = vmatprep.subr.bf16.mxu0 %v553
      %639 = vmatpush2.bf16.msra.mxu0 %v552
      %640 = vmatprep.subr.bf16.mxu0 %v551
      %641 = vmatpush2.bf16.msra.mxu0 %v550
      %642 = vmatprep.subr.bf16.mxu0 %v549
      %643 = vmatpush2.bf16.msra.mxu0 %v548
      %644 = vmatprep.subr.bf16.mxu0 %v547
      %645 = vmatpush2.bf16.msra.mxu0 %v546
      %646 = vmatprep.subr.bf16.mxu0 %v545
      %647 = vmatpush2.bf16.msra.mxu0 %v544
      %648 = vmatprep.subr.bf16.mxu0 %v543
      %649 = vmatpush2.bf16.msra.mxu0 %v542
      %650 = vmatprep.subr.bf16.mxu0 %v541
      %651 = vmatpush2.bf16.msra.mxu0 %v540
      %652 = vmatprep.mubr.bf16.mxu0 %v333
      %653 = vmatmul.mubr.bf16.gmra.mxu0 %v332
      %v654 = vpop.f32.mrf.mxu0
      %v655 = vadd.f32 0.0, %v654
      %v656 = vpop.f32.mrf.mxu0
      %v657 = vadd.f32 0.0, %v656
      %v658 = vpop.f32.mrf.mxu0
      %v659 = vadd.f32 0.0, %v658
      %v660 = vpop.f32.mrf.mxu0
      %v661 = vadd.f32 0.0, %v660
      %662 = vmatprep.mubr.bf16.mxu0 %v336
      %663 = vmatmul.mubr.bf16.gmra.mxu0 %v335
      %v664 = vpop.f32.mrf.mxu0
      %v665 = vadd.f32 0.0, %v664
      %v666 = vpop.f32.mrf.mxu0
      %v667 = vadd.f32 0.0, %v666
      %v668 = vpop.f32.mrf.mxu0
      %v669 = vadd.f32 0.0, %v668
      %v670 = vpop.f32.mrf.mxu0
      %v671 = vadd.f32 0.0, %v670
      %672 = vmatprep.mubr.bf16.mxu0 %v339
      %673 = vmatmul.mubr.bf16.gmra.mxu0 %v338
      %v674 = vpop.f32.mrf.mxu0
      %v675 = vadd.f32 0.0, %v674
      %v676 = vpop.f32.mrf.mxu0
      %v677 = vadd.f32 0.0, %v676
      %v678 = vpop.f32.mrf.mxu0
      %v679 = vadd.f32 0.0, %v678
      %v680 = vpop.f32.mrf.mxu0
      %v681 = vadd.f32 0.0, %v680
      %682 = vmatprep.mubr.bf16.mxu0 %v342
      %683 = vmatmul.mubr.bf16.gmra.mxu0 %v341
      %v684 = vpop.f32.mrf.mxu0
      %v685 = vadd.f32 0.0, %v684
      %v686 = vpop.f32.mrf.mxu0
      %v687 = vadd.f32 0.0, %v686
      %v688 = vpop.f32.mrf.mxu0
      %v689 = vadd.f32 0.0, %v688
      %v690 = vpop.f32.mrf.mxu0
      %v691 = vadd.f32 0.0, %v690
      %692 = vmatprep.mubr.bf16.mxu0 %v345
      %693 = vmatmul.mubr.bf16.gmra.mxu0 %v344
      %v694 = vpop.f32.mrf.mxu0
      %v695 = vadd.f32 0.0, %v694
      %v696 = vpop.f32.mrf.mxu0
      %v697 = vadd.f32 0.0, %v696
      %v698 = vpop.f32.mrf.mxu0
      %v699 = vadd.f32 0.0, %v698
      %v700 = vpop.f32.mrf.mxu0
      %v701 = vadd.f32 0.0, %v700
      %702 = vmatprep.mubr.bf16.mxu0 %v348
      %703 = vmatmul.mubr.bf16.gmra.mxu0 %v347
      %v704 = vpop.f32.mrf.mxu0
      %v705 = vadd.f32 0.0, %v704
      %v706 = vpop.f32.mrf.mxu0
      %v707 = vadd.f32 0.0, %v706
      %v708 = vpop.f32.mrf.mxu0
      %v709 = vadd.f32 0.0, %v708
      %v710 = vpop.f32.mrf.mxu0
      %v711 = vadd.f32 0.0, %v710
      %712 = vmatprep.mubr.bf16.mxu0 %v351
      %713 = vmatmul.mubr.bf16.gmra.mxu0 %v350
      %v714 = vpop.f32.mrf.mxu0
      %v715 = vadd.f32 0.0, %v714
      %v716 = vpop.f32.mrf.mxu0
      %v717 = vadd.f32 0.0, %v716
      %v718 = vpop.f32.mrf.mxu0
      %v719 = vadd.f32 0.0, %v718
      %v720 = vpop.f32.mrf.mxu0
      %v721 = vadd.f32 0.0, %v720
      %722 = vmatprep.mubr.bf16.mxu0 %v354
      %723 = vmatmul.mubr.bf16.gmra.mxu0 %v353
      %v724 = vpop.f32.mrf.mxu0
      %v725 = vadd.f32 0.0, %v724
      %v726 = vpop.f32.mrf.mxu0
      %v727 = vadd.f32 0.0, %v726
      %v728 = vpop.f32.mrf.mxu0
      %v729 = vadd.f32 0.0, %v728
      %v730 = vpop.f32.mrf.mxu0
      %v731 = vadd.f32 0.0, %v730
      %732 = vdwg.mxu0
      %733 = vmatprep.subr.bf16.mxu0 %v571
      %734 = vmatpush1.bf16.msra.mxu0 %v570
      %735 = vmatprep.subr.bf16.mxu0 %v569
      %736 = vmatpush1.bf16.msra.mxu0 %v568
      %737 = vmatprep.subr.bf16.mxu0 %v567
      %738 = vmatpush1.bf16.msra.mxu0 %v566
      %739 = vmatprep.subr.bf16.mxu0 %v565
      %740 = vmatpush1.bf16.msra.mxu0 %v564
      %741 = vmatprep.subr.bf16.mxu0 %v563
      %742 = vmatpush1.bf16.msra.mxu0 %v562
      %743 = vmatprep.subr.bf16.mxu0 %v561
      %744 = vmatpush1.bf16.msra.mxu0 %v560
      %745 = vmatprep.subr.bf16.mxu0 %v559
      %746 = vmatpush1.bf16.msra.mxu0 %v558
      %747 = vmatprep.subr.bf16.mxu0 %v557
      %748 = vmatpush1.bf16.msra.mxu0 %v556
      %749 = vmatprep.subr.bf16.mxu0 0
      %750 = vmatpush2.bf16.msra.mxu0 0
      %751 = vmatprep.subr.bf16.mxu0 0
      %752 = vmatpush2.bf16.msra.mxu0 0
      %753 = vmatprep.subr.bf16.mxu0 0
      %754 = vmatpush2.bf16.msra.mxu0 0
      %755 = vmatprep.subr.bf16.mxu0 0
      %756 = vmatpush2.bf16.msra.mxu0 0
      %757 = vmatprep.subr.bf16.mxu0 0
      %758 = vmatpush2.bf16.msra.mxu0 0
      %759 = vmatprep.subr.bf16.mxu0 0
      %760 = vmatpush2.bf16.msra.mxu0 0
      %761 = vmatprep.subr.bf16.mxu0 0
      %762 = vmatpush2.bf16.msra.mxu0 0
      %763 = vmatprep.subr.bf16.mxu0 0
      %764 = vmatpush2.bf16.msra.mxu0 0
      %765 = vmatprep.mubr.bf16.mxu0 0
      %766 = vmatmul.mubr.bf16.gmra.mxu0 %v334
      %v767 = vpop.f32.mrf.mxu0
      %v768 = vadd.f32 %v655, %v767
      %v769 = vpop.f32.mrf.mxu0
      %v770 = vadd.f32 %v657, %v769
      %v771 = vpop.f32.mrf.mxu0
      %v772 = vadd.f32 %v659, %v771
      %v773 = vpop.f32.mrf.mxu0
      %v774 = vadd.f32 %v661, %v773
      %775 = vmatprep.mubr.bf16.mxu0 0
      %776 = vmatmul.mubr.bf16.gmra.mxu0 %v337
      %v777 = vpop.f32.mrf.mxu0
      %v778 = vadd.f32 %v665, %v777
      %v779 = vpop.f32.mrf.mxu0
      %v780 = vadd.f32 %v667, %v779
      %v781 = vpop.f32.mrf.mxu0
      %v782 = vadd.f32 %v669, %v781
      %v783 = vpop.f32.mrf.mxu0
      %v784 = vadd.f32 %v671, %v783
      %785 = vmatprep.mubr.bf16.mxu0 0
      %786 = vmatmul.mubr.bf16.gmra.mxu0 %v340
      %v787 = vpop.f32.mrf.mxu0
      %v788 = vadd.f32 %v675, %v787
      %v789 = vpop.f32.mrf.mxu0
      %v790 = vadd.f32 %v677, %v789
      %v791 = vpop.f32.mrf.mxu0
      %v792 = vadd.f32 %v679, %v791
      %v793 = vpop.f32.mrf.mxu0
      %v794 = vadd.f32 %v681, %v793
      %795 = vmatprep.mubr.bf16.mxu0 0
      %796 = vmatmul.mubr.bf16.gmra.mxu0 %v343
      %v797 = vpop.f32.mrf.mxu0
      %v798 = vadd.f32 %v685, %v797
      %v799 = vpop.f32.mrf.mxu0
      %v800 = vadd.f32 %v687, %v799
      %v801 = vpop.f32.mrf.mxu0
      %v802 = vadd.f32 %v689, %v801
      %v803 = vpop.f32.mrf.mxu0
      %v804 = vadd.f32 %v691, %v803
      %805 = vmatprep.mubr.bf16.mxu0 0
      %806 = vmatmul.mubr.bf16.gmra.mxu0 %v346
      %v807 = vpop.f32.mrf.mxu0
      %v808 = vadd.f32 %v695, %v807
      %v809 = vpop.f32.mrf.mxu0
      %v810 = vadd.f32 %v697, %v809
      %v811 = vpop.f32.mrf.mxu0
      %v812 = vadd.f32 %v699, %v811
      %v813 = vpop.f32.mrf.mxu0
      %v814 = vadd.f32 %v701, %v813
      %815 = vmatprep.mubr.bf16.mxu0 0
      %816 = vmatmul.mubr.bf16.gmra.mxu0 %v349
      %v817 = vpop.f32.mrf.mxu0
      %v818 = vadd.f32 %v705, %v817
      %v819 = vpop.f32.mrf.mxu0
      %v820 = vadd.f32 %v707, %v819
      %v821 = vpop.f32.mrf.mxu0
      %v822 = vadd.f32 %v709, %v821
      %v823 = vpop.f32.mrf.mxu0
      %v824 = vadd.f32 %v711, %v823
      %825 = vmatprep.mubr.bf16.mxu0 0
      %826 = vmatmul.mubr.bf16.gmra.mxu0 %v352
      %v827 = vpop.f32.mrf.mxu0
      %v828 = vadd.f32 %v715, %v827
      %v829 = vpop.f32.mrf.mxu0
      %v830 = vadd.f32 %v717, %v829
      %v831 = vpop.f32.mrf.mxu0
      %v832 = vadd.f32 %v719, %v831
      %v833 = vpop.f32.mrf.mxu0
      %v834 = vadd.f32 %v721, %v833
      %835 = vmatprep.mubr.bf16.mxu0 0
      %836 = vmatmul.mubr.bf16.gmra.mxu0 %v355
      %v837 = vpop.f32.mrf.mxu0
      %v838 = vadd.f32 %v725, %v837
      %v839 = vpop.f32.mrf.mxu0
      %v840 = vadd.f32 %v727, %v839
      %v841 = vpop.f32.mrf.mxu0
      %v842 = vadd.f32 %v729, %v841
      %v843 = vpop.f32.mrf.mxu0
      %v844 = vadd.f32 %v731, %v843
      %845 = vdwg.mxu0
      %v846 = vpack.c.bf16 %v772, %v768
      %v847 = vpack.c.bf16 %v782, %v778
      %v848 = vpack.c.bf16 %v792, %v788
      %v849 = vpack.c.bf16 %v802, %v798
      %v850 = vpack.c.bf16 %v812, %v808
      %v851 = vpack.c.bf16 %v822, %v818
      %v852 = vpack.c.bf16 %v832, %v828
      %v853 = vpack.c.bf16 %v842, %v838
      %862 = vrot.lane.b32.xlu0 %v846, 64
      %v863 = vpop.permute.xlu0 %862
      %864 = vrot.lane.b32.xlu0 %v847, 64
      %v865 = vpop.permute.xlu0 %864
      %866 = vrot.lane.b32.xlu0 %v848, 64
      %v867 = vpop.permute.xlu0 %866
      %868 = vrot.lane.b32.xlu0 %v849, 64
      %v869 = vpop.permute.xlu0 %868
      %870 = vrot.lane.b32.xlu0 %v850, 64
      %v871 = vpop.permute.xlu0 %870
      %872 = vrot.lane.b32.xlu0 %v851, 64
      %v873 = vpop.permute.xlu0 %872
      %874 = vrot.lane.b32.xlu0 %v852, 64
      %v875 = vpop.permute.xlu0 %874
      %876 = vrot.lane.b32.xlu0 %v853, 64
      %v877 = vpop.permute.xlu0 %876
      %vm878 = vcmask 523264
      %v880 = vsel %vm878, %v846, 0
      %v883 = vsel %vm878, %v847, 0
      %v886 = vsel %vm878, %v848, 0
      %v889 = vsel %vm878, %v849, 0
      %v892 = vsel %vm878, %v850, 0
      %v895 = vsel %vm878, %v851, 0
      %v898 = vsel %vm878, %v852, 0
      %v901 = vsel %vm878, %v853, 0
      %v904 = vsel %vm878, %v863, 0
      %v907 = vsel %vm878, %v865, 0
      %v910 = vsel %vm878, %v867, 0
      %v913 = vsel %vm878, %v869, 0
      %v916 = vsel %vm878, %v871, 0
      %v919 = vsel %vm878, %v873, 0
      %v922 = vsel %vm878, %v875, 0
      %v925 = vsel %vm878, %v877, 0
      %927 = vmatprep.subr.bf16.mxu0 0
      %928 = vmatpush1.bf16.xpose.msra.mxu0 %v925
      %929 = vmatprep.subr.bf16.mxu0 0
      %930 = vmatpush1.bf16.xpose.msra.mxu0 %v922
      %931 = vmatprep.subr.bf16.mxu0 0
      %932 = vmatpush1.bf16.xpose.msra.mxu0 %v919
      %933 = vmatprep.subr.bf16.mxu0 0
      %934 = vmatpush1.bf16.xpose.msra.mxu0 %v916
      %935 = vmatprep.subr.bf16.mxu0 0
      %936 = vmatpush1.bf16.xpose.msra.mxu0 %v913
      %937 = vmatprep.subr.bf16.mxu0 0
      %938 = vmatpush1.bf16.xpose.msra.mxu0 %v910
      %939 = vmatprep.subr.bf16.mxu0 0
      %940 = vmatpush1.bf16.xpose.msra.mxu0 %v907
      %941 = vmatprep.subr.bf16.mxu0 0
      %942 = vmatpush1.bf16.xpose.msra.mxu0 %v904
      %943 = vmatprep.subr.bf16.mxu0 0
      %944 = vmatpush2.bf16.xpose.msra.mxu0 0
      %945 = vmatprep.subr.bf16.mxu0 0
      %946 = vmatpush2.bf16.xpose.msra.mxu0 0
      %947 = vmatprep.subr.bf16.mxu0 0
      %948 = vmatpush2.bf16.xpose.msra.mxu0 0
      %949 = vmatprep.subr.bf16.mxu0 0
      %950 = vmatpush2.bf16.xpose.msra.mxu0 0
      %951 = vmatprep.subr.bf16.mxu0 0
      %952 = vmatpush2.bf16.xpose.msra.mxu0 0
      %953 = vmatprep.subr.bf16.mxu0 0
      %954 = vmatpush2.bf16.xpose.msra.mxu0 0
      %955 = vmatprep.subr.bf16.mxu0 0
      %956 = vmatpush2.bf16.xpose.msra.mxu0 0
      %957 = vmatprep.subr.bf16.mxu0 0
      %958 = vmatpush2.bf16.xpose.msra.mxu0 0
      %959 = vmatprep.mubr.bf16.mxu0 0
      %960 = vmatmul.mubr.bf16.gmra.mxu0 %v880
      %v961 = vpop.f32.mrf.mxu0
      %v962 = vadd.f32 0.0, %v961
      %v963 = vpop.f32.mrf.mxu0
      %v964 = vpop.f32.mrf.mxu0
      %v965 = vadd.f32 0.0, %v964
      %v966 = vpop.f32.mrf.mxu0
      %967 = vmatprep.mubr.bf16.mxu0 0
      %968 = vmatmul.mubr.bf16.gmra.mxu0 %v883
      %v969 = vpop.f32.mrf.mxu0
      %v970 = vadd.f32 0.0, %v969
      %v971 = vpop.f32.mrf.mxu0
      %v972 = vpop.f32.mrf.mxu0
      %v973 = vadd.f32 0.0, %v972
      %v974 = vpop.f32.mrf.mxu0
      %975 = vmatprep.mubr.bf16.mxu0 0
      %976 = vmatmul.mubr.bf16.gmra.mxu0 %v886
      %v977 = vpop.f32.mrf.mxu0
      %v978 = vadd.f32 0.0, %v977
      %v979 = vpop.f32.mrf.mxu0
      %v980 = vpop.f32.mrf.mxu0
      %v981 = vadd.f32 0.0, %v980
      %v982 = vpop.f32.mrf.mxu0
      %983 = vmatprep.mubr.bf16.mxu0 0
      %984 = vmatmul.mubr.bf16.gmra.mxu0 %v889
      %v985 = vpop.f32.mrf.mxu0
      %v986 = vadd.f32 0.0, %v985
      %v987 = vpop.f32.mrf.mxu0
      %v988 = vpop.f32.mrf.mxu0
      %v989 = vadd.f32 0.0, %v988
      %v990 = vpop.f32.mrf.mxu0
      %991 = vmatprep.mubr.bf16.mxu0 0
      %992 = vmatmul.mubr.bf16.gmra.mxu0 %v892
      %v993 = vpop.f32.mrf.mxu0
      %v994 = vadd.f32 0.0, %v993
      %v995 = vpop.f32.mrf.mxu0
      %v996 = vpop.f32.mrf.mxu0
      %v997 = vadd.f32 0.0, %v996
      %v998 = vpop.f32.mrf.mxu0
      %999 = vmatprep.mubr.bf16.mxu0 0
      %1000 = vmatmul.mubr.bf16.gmra.mxu0 %v895
      %v1001 = vpop.f32.mrf.mxu0
      %v1002 = vadd.f32 0.0, %v1001
      %v1003 = vpop.f32.mrf.mxu0
      %v1004 = vpop.f32.mrf.mxu0
      %v1005 = vadd.f32 0.0, %v1004
      %v1006 = vpop.f32.mrf.mxu0
      %1007 = vmatprep.mubr.bf16.mxu0 0
      %1008 = vmatmul.mubr.bf16.gmra.mxu0 %v898
      %v1009 = vpop.f32.mrf.mxu0
      %v1010 = vadd.f32 0.0, %v1009
      %v1011 = vpop.f32.mrf.mxu0
      %v1012 = vpop.f32.mrf.mxu0
      %v1013 = vadd.f32 0.0, %v1012
      %v1014 = vpop.f32.mrf.mxu0
      %1015 = vmatprep.mubr.bf16.mxu0 0
      %1016 = vmatmul.mubr.bf16.gmra.mxu0 %v901
      %v1017 = vpop.f32.mrf.mxu0
      %v1018 = vadd.f32 0.0, %v1017
      %v1019 = vpop.f32.mrf.mxu0
      %v1020 = vpop.f32.mrf.mxu0
      %v1021 = vadd.f32 0.0, %v1020
      %v1022 = vpop.f32.mrf.mxu0
      %1023 = vdwg.mxu0
      %v1024 = vmul.f32 %v962, 0.05103104
      %v1025 = vmul.f32 %v965, 0.05103104
      %v1026 = vmul.f32 %v970, 0.05103104
      %v1027 = vmul.f32 %v973, 0.05103104
      %v1028 = vmul.f32 %v978, 0.05103104
      %v1029 = vmul.f32 %v981, 0.05103104
      %v1030 = vmul.f32 %v986, 0.05103104
      %v1031 = vmul.f32 %v989, 0.05103104
      %v1032 = vmul.f32 %v994, 0.05103104
      %v1033 = vmul.f32 %v997, 0.05103104
      %v1034 = vmul.f32 %v1002, 0.05103104
      %v1035 = vmul.f32 %v1005, 0.05103104
      %v1036 = vmul.f32 %v1010, 0.05103104
      %v1037 = vmul.f32 %v1013, 0.05103104
      %v1038 = vmul.f32 %v1018, 0.05103104
      %v1039 = vmul.f32 %v1021, 0.05103104
      %v1040 = vld [vmem:[%s2] sm:$0xff]
      %v1041 = vld [vmem:[%s2 + $0x8] sm:$0xff]
      %v1042 = vld [vmem:[%s2 + $0x10] sm:$0xff]
      %v1043 = vld [vmem:[%s2 + $0x18] sm:$0xff]
      %v1044 = vld [vmem:[%s2 + $0x20] sm:$0xff]
      %v1045 = vld [vmem:[%s2 + $0x28] sm:$0xff]
      %v1046 = vld [vmem:[%s2 + $0x30] sm:$0xff]
      %v1047 = vld [vmem:[%s2 + $0x38] sm:$0xff]
      %v1048 = vld [vmem:[%s2 + $0x40] sm:$0xff]
      %v1049 = vld [vmem:[%s2 + $0x48] sm:$0xff]
      %v1050 = vld [vmem:[%s2 + $0x50] sm:$0xff]
      %v1051 = vld [vmem:[%s2 + $0x58] sm:$0xff]
      %v1052 = vld [vmem:[%s2 + $0x60] sm:$0xff]
      %v1053 = vld [vmem:[%s2 + $0x68] sm:$0xff]
      %v1054 = vld [vmem:[%s2 + $0x70] sm:$0xff]
      %v1055 = vld [vmem:[%s2 + $0x78] sm:$0xff]
      %v1056 = vadd.f32 %v1024, %v1040
      %v1057 = vadd.f32 %v1025, %v1041
      %v1058 = vadd.f32 %v1026, %v1042
      %v1059 = vadd.f32 %v1027, %v1043
      %v1060 = vadd.f32 %v1028, %v1044
      %v1061 = vadd.f32 %v1029, %v1045
      %v1062 = vadd.f32 %v1030, %v1046
      %v1063 = vadd.f32 %v1031, %v1047
      %v1064 = vadd.f32 %v1032, %v1048
      %v1065 = vadd.f32 %v1033, %v1049
      %v1066 = vadd.f32 %v1034, %v1050
      %v1067 = vadd.f32 %v1035, %v1051
      %v1068 = vadd.f32 %v1036, %v1052
      %v1069 = vadd.f32 %v1037, %v1053
      %v1070 = vadd.f32 %v1038, %v1054
      %v1071 = vadd.f32 %v1039, %v1055
      %1072 = vmax.xlane.f32.xlu0 %v1056
      %v1073 = vpop.xlane.xlu0 %1072
      %1074 = vmax.xlane.f32.xlu0 %v1057
      %v1075 = vpop.xlane.xlu0 %1074
      %1076 = vmax.xlane.f32.xlu0 %v1058
      %v1077 = vpop.xlane.xlu0 %1076
      %1078 = vmax.xlane.f32.xlu0 %v1059
      %v1079 = vpop.xlane.xlu0 %1078
      %1080 = vmax.xlane.f32.xlu0 %v1060
      %v1081 = vpop.xlane.xlu0 %1080
      %1082 = vmax.xlane.f32.xlu0 %v1061
      %v1083 = vpop.xlane.xlu0 %1082
      %1084 = vmax.xlane.f32.xlu0 %v1062
      %v1085 = vpop.xlane.xlu0 %1084
      %1086 = vmax.xlane.f32.xlu0 %v1063
      %v1087 = vpop.xlane.xlu0 %1086
      %1088 = vmax.xlane.f32.xlu0 %v1064
      %v1089 = vpop.xlane.xlu0 %1088
      %1090 = vmax.xlane.f32.xlu0 %v1065
      %v1091 = vpop.xlane.xlu0 %1090
      %1092 = vmax.xlane.f32.xlu0 %v1066
      %v1093 = vpop.xlane.xlu0 %1092
      %1094 = vmax.xlane.f32.xlu0 %v1067
      %v1095 = vpop.xlane.xlu0 %1094
      %1096 = vmax.xlane.f32.xlu0 %v1068
      %v1097 = vpop.xlane.xlu0 %1096
      %1098 = vmax.xlane.f32.xlu0 %v1069
      %v1099 = vpop.xlane.xlu0 %1098
      %1100 = vmax.xlane.f32.xlu0 %v1070
      %v1101 = vpop.xlane.xlu0 %1100
      %1102 = vmax.xlane.f32.xlu0 %v1071
      %v1103 = vpop.xlane.xlu0 %1102
      %v1104 = vsub.f32 %v1056, %v1073
      %v1105 = vsub.f32 %v1057, %v1075
      %v1106 = vsub.f32 %v1058, %v1077
      %v1107 = vsub.f32 %v1059, %v1079
      %v1108 = vsub.f32 %v1060, %v1081
      %v1109 = vsub.f32 %v1061, %v1083
      %v1110 = vsub.f32 %v1062, %v1085
      %v1111 = vsub.f32 %v1063, %v1087
      %v1112 = vsub.f32 %v1064, %v1089
      %v1113 = vsub.f32 %v1065, %v1091
      %v1114 = vsub.f32 %v1066, %v1093
      %v1115 = vsub.f32 %v1067, %v1095
      %v1116 = vsub.f32 %v1068, %v1097
      %v1117 = vsub.f32 %v1069, %v1099
      %v1118 = vsub.f32 %v1070, %v1101
      %v1119 = vsub.f32 %v1071, %v1103
      %v1120 = vmul.f32 %v1104, 1.442695
      %v1121 = vpow.pop %v1120
      %v1122 = vmul.f32 %v1105, 1.442695
      %v1123 = vpow.pop %v1122
      %v1124 = vmul.f32 %v1106, 1.442695
      %v1125 = vpow.pop %v1124
      %v1126 = vmul.f32 %v1107, 1.442695
      %v1127 = vpow.pop %v1126
      %v1128 = vmul.f32 %v1108, 1.442695
      %v1129 = vpow.pop %v1128
      %v1130 = vmul.f32 %v1109, 1.442695
      %v1131 = vpow.pop %v1130
      %v1132 = vmul.f32 %v1110, 1.442695
      %v1133 = vpow.pop %v1132
      %v1134 = vmul.f32 %v1111, 1.442695
      %v1135 = vpow.pop %v1134
      %v1136 = vmul.f32 %v1112, 1.442695
      %v1137 = vpow.pop %v1136
      %v1138 = vmul.f32 %v1113, 1.442695
      %v1139 = vpow.pop %v1138
      %v1140 = vmul.f32 %v1114, 1.442695
      %v1141 = vpow.pop %v1140
      %v1142 = vmul.f32 %v1115, 1.442695
      %v1143 = vpow.pop %v1142
      %v1144 = vmul.f32 %v1116, 1.442695
      %v1145 = vpow.pop %v1144
      %v1146 = vmul.f32 %v1117, 1.442695
      %v1147 = vpow.pop %v1146
      %v1148 = vmul.f32 %v1118, 1.442695
      %v1149 = vpow.pop %v1148
      %v1150 = vmul.f32 %v1119, 1.442695
      %v1151 = vpow.pop %v1150
      %1152 = vadd.xlane.f32.xlu0 %v1121
      %v1153 = vpop.xlane.xlu0 %1152
      %1154 = vadd.xlane.f32.xlu0 %v1123
      %v1155 = vpop.xlane.xlu0 %1154
      %1156 = vadd.xlane.f32.xlu0 %v1125
      %v1157 = vpop.xlane.xlu0 %1156
      %1158 = vadd.xlane.f32.xlu0 %v1127
      %v1159 = vpop.xlane.xlu0 %1158
      %1160 = vadd.xlane.f32.xlu0 %v1129
      %v1161 = vpop.xlane.xlu0 %1160
      %1162 = vadd.xlane.f32.xlu0 %v1131
      %v1163 = vpop.xlane.xlu0 %1162
      %1164 = vadd.xlane.f32.xlu0 %v1133
      %v1165 = vpop.xlane.xlu0 %1164
      %1166 = vadd.xlane.f32.xlu0 %v1135
      %v1167 = vpop.xlane.xlu0 %1166
      %1168 = vadd.xlane.f32.xlu0 %v1137
      %v1169 = vpop.xlane.xlu0 %1168
      %1170 = vadd.xlane.f32.xlu0 %v1139
      %v1171 = vpop.xlane.xlu0 %1170
      %1172 = vadd.xlane.f32.xlu0 %v1141
      %v1173 = vpop.xlane.xlu0 %1172
      %1174 = vadd.xlane.f32.xlu0 %v1143
      %v1175 = vpop.xlane.xlu0 %1174
      %1176 = vadd.xlane.f32.xlu0 %v1145
      %v1177 = vpop.xlane.xlu0 %1176
      %1178 = vadd.xlane.f32.xlu0 %v1147
      %v1179 = vpop.xlane.xlu0 %1178
      %1180 = vadd.xlane.f32.xlu0 %v1149
      %v1181 = vpop.xlane.xlu0 %1180
      %1182 = vadd.xlane.f32.xlu0 %v1151
      %v1183 = vpop.xlane.xlu0 %1182
      %v1184 = vrcp.pop %v1153
      %v1185 = vrcp.pop %v1155
      %v1186 = vrcp.pop %v1157
      %v1187 = vrcp.pop %v1159
      %v1188 = vrcp.pop %v1161
      %v1189 = vrcp.pop %v1163
      %v1190 = vrcp.pop %v1165
      %v1191 = vrcp.pop %v1167
      %v1192 = vrcp.pop %v1169
      %v1193 = vrcp.pop %v1171
      %v1194 = vrcp.pop %v1173
      %v1195 = vrcp.pop %v1175
      %v1196 = vrcp.pop %v1177
      %v1197 = vrcp.pop %v1179
      %v1198 = vrcp.pop %v1181
      %v1199 = vrcp.pop %v1183
      %v1200 = vmul.f32 %v1121, %v1184
      %v1201 = vmul.f32 %v1123, %v1185
      %v1202 = vmul.f32 %v1125, %v1186
      %v1203 = vmul.f32 %v1127, %v1187
      %v1204 = vmul.f32 %v1129, %v1188
      %v1205 = vmul.f32 %v1131, %v1189
      %v1206 = vmul.f32 %v1133, %v1190
      %v1207 = vmul.f32 %v1135, %v1191
      %v1208 = vmul.f32 %v1137, %v1192
      %v1209 = vmul.f32 %v1139, %v1193
      %v1210 = vmul.f32 %v1141, %v1194
      %v1211 = vmul.f32 %v1143, %v1195
      %v1212 = vmul.f32 %v1145, %v1196
      %v1213 = vmul.f32 %v1147, %v1197
      %v1214 = vmul.f32 %v1149, %v1198
      %v1215 = vmul.f32 %v1151, %v1199
      %v1216 = vpack.c.bf16 %v1201, %v1200
      %v1217 = vpack.c.bf16 %v1203, %v1202
      %v1218 = vpack.c.bf16 %v1205, %v1204
      %v1219 = vpack.c.bf16 %v1207, %v1206
      %v1220 = vpack.c.bf16 %v1209, %v1208
      %v1221 = vpack.c.bf16 %v1211, %v1210
      %v1222 = vpack.c.bf16 %v1213, %v1212
      %v1223 = vpack.c.bf16 %v1215, %v1214
      %v1224 = vpack.c.bf16 %v774, %v770
      %v1225 = vpack.c.bf16 %v784, %v780
      %v1226 = vpack.c.bf16 %v794, %v790
      %v1227 = vpack.c.bf16 %v804, %v800
      %v1228 = vpack.c.bf16 %v814, %v810
      %v1229 = vpack.c.bf16 %v824, %v820
      %v1230 = vpack.c.bf16 %v834, %v830
      %v1231 = vpack.c.bf16 %v844, %v840
      %1232 = vmatprep.subr.bf16.mxu0 0
      %1233 = vmatpush1.bf16.msra.mxu0 %v1231
      %1234 = vmatprep.subr.bf16.mxu0 0
      %1235 = vmatpush1.bf16.msra.mxu0 %v1230
      %1236 = vmatprep.subr.bf16.mxu0 0
      %1237 = vmatpush1.bf16.msra.mxu0 %v1229
      %1238 = vmatprep.subr.bf16.mxu0 0
      %1239 = vmatpush1.bf16.msra.mxu0 %v1228
      %1240 = vmatprep.subr.bf16.mxu0 0
      %1241 = vmatpush1.bf16.msra.mxu0 %v1227
      %1242 = vmatprep.subr.bf16.mxu0 0
      %1243 = vmatpush1.bf16.msra.mxu0 %v1226
      %1244 = vmatprep.subr.bf16.mxu0 0
      %1245 = vmatpush1.bf16.msra.mxu0 %v1225
      %1246 = vmatprep.subr.bf16.mxu0 0
      %1247 = vmatpush1.bf16.msra.mxu0 %v1224
      %1248 = vmatprep.subr.bf16.mxu0 0
      %1249 = vmatpush2.bf16.msra.mxu0 0
      %1250 = vmatprep.subr.bf16.mxu0 0
      %1251 = vmatpush2.bf16.msra.mxu0 0
      %1252 = vmatprep.subr.bf16.mxu0 0
      %1253 = vmatpush2.bf16.msra.mxu0 0
      %1254 = vmatprep.subr.bf16.mxu0 0
      %1255 = vmatpush2.bf16.msra.mxu0 0
      %1256 = vmatprep.subr.bf16.mxu0 0
      %1257 = vmatpush2.bf16.msra.mxu0 0
      %1258 = vmatprep.subr.bf16.mxu0 0
      %1259 = vmatpush2.bf16.msra.mxu0 0
      %1260 = vmatprep.subr.bf16.mxu0 0
      %1261 = vmatpush2.bf16.msra.mxu0 0
      %1262 = vmatprep.subr.bf16.mxu0 0
      %1263 = vmatpush2.bf16.msra.mxu0 0
      %1264 = vmatprep.mubr.bf16.mxu0 0
      %1265 = vmatmul.mubr.bf16.gmra.mxu0 %v1216
      %v1266 = vpop.f32.mrf.mxu0
      %v1267 = vadd.f32 0.0, %v1266
      %v1268 = vpop.f32.mrf.mxu0
      %v1269 = vpop.f32.mrf.mxu0
      %v1270 = vadd.f32 0.0, %v1269
      %v1271 = vpop.f32.mrf.mxu0
      %1272 = vmatprep.mubr.bf16.mxu0 0
      %1273 = vmatmul.mubr.bf16.gmra.mxu0 %v1217
      %v1274 = vpop.f32.mrf.mxu0
      %v1275 = vadd.f32 0.0, %v1274
      %v1276 = vpop.f32.mrf.mxu0
      %v1277 = vpop.f32.mrf.mxu0
      %v1278 = vadd.f32 0.0, %v1277
      %v1279 = vpop.f32.mrf.mxu0
      %1280 = vmatprep.mubr.bf16.mxu0 0
      %1281 = vmatmul.mubr.bf16.gmra.mxu0 %v1218
      %v1282 = vpop.f32.mrf.mxu0
      %v1283 = vadd.f32 0.0, %v1282
      %v1284 = vpop.f32.mrf.mxu0
      %v1285 = vpop.f32.mrf.mxu0
      %v1286 = vadd.f32 0.0, %v1285
      %v1287 = vpop.f32.mrf.mxu0
      %1288 = vmatprep.mubr.bf16.mxu0 0
      %1289 = vmatmul.mubr.bf16.gmra.mxu0 %v1219
      %v1290 = vpop.f32.mrf.mxu0
      %v1291 = vadd.f32 0.0, %v1290
      %v1292 = vpop.f32.mrf.mxu0
      %v1293 = vpop.f32.mrf.mxu0
      %v1294 = vadd.f32 0.0, %v1293
      %v1295 = vpop.f32.mrf.mxu0
      %1296 = vmatprep.mubr.bf16.mxu0 0
      %1297 = vmatmul.mubr.bf16.gmra.mxu0 %v1220
      %v1298 = vpop.f32.mrf.mxu0
      %v1299 = vadd.f32 0.0, %v1298
      %v1300 = vpop.f32.mrf.mxu0
      %v1301 = vpop.f32.mrf.mxu0
      %v1302 = vadd.f32 0.0, %v1301
      %v1303 = vpop.f32.mrf.mxu0
      %1304 = vmatprep.mubr.bf16.mxu0 0
      %1305 = vmatmul.mubr.bf16.gmra.mxu0 %v1221
      %v1306 = vpop.f32.mrf.mxu0
      %v1307 = vadd.f32 0.0, %v1306
      %v1308 = vpop.f32.mrf.mxu0
      %v1309 = vpop.f32.mrf.mxu0
      %v1310 = vadd.f32 0.0, %v1309
      %v1311 = vpop.f32.mrf.mxu0
      %1312 = vmatprep.mubr.bf16.mxu0 0
      %1313 = vmatmul.mubr.bf16.gmra.mxu0 %v1222
      %v1314 = vpop.f32.mrf.mxu0
      %v1315 = vadd.f32 0.0, %v1314
      %v1316 = vpop.f32.mrf.mxu0
      %v1317 = vpop.f32.mrf.mxu0
      %v1318 = vadd.f32 0.0, %v1317
      %v1319 = vpop.f32.mrf.mxu0
      %1320 = vmatprep.mubr.bf16.mxu0 0
      %1321 = vmatmul.mubr.bf16.gmra.mxu0 %v1223
      %v1322 = vpop.f32.mrf.mxu0
      %v1323 = vadd.f32 0.0, %v1322
      %v1324 = vpop.f32.mrf.mxu0
      %v1325 = vpop.f32.mrf.mxu0
      %v1326 = vadd.f32 0.0, %v1325
      %v1327 = vpop.f32.mrf.mxu0
      %1328 = vdwg.mxu0
      %1329 = vst.msk [vmem:[%s170] sm:$0xff] %vm878, %v1267
      %1330 = vst.msk [vmem:[%s170 + $0x8] sm:$0xff] %vm878, %v1270
      %1331 = vst.msk [vmem:[%s170 + $0x10] sm:$0xff] %vm878, %v1275
      %1332 = vst.msk [vmem:[%s170 + $0x18] sm:$0xff] %vm878, %v1278
      %1333 = vst.msk [vmem:[%s170 + $0x20] sm:$0xff] %vm878, %v1283
      %1334 = vst.msk [vmem:[%s170 + $0x28] sm:$0xff] %vm878, %v1286
      %1335 = vst.msk [vmem:[%s170 + $0x30] sm:$0xff] %vm878, %v1291
      %1336 = vst.msk [vmem:[%s170 + $0x38] sm:$0xff] %vm878, %v1294
      %1337 = vst.msk [vmem:[%s170 + $0x40] sm:$0xff] %vm878, %v1299
      %1338 = vst.msk [vmem:[%s170 + $0x48] sm:$0xff] %vm878, %v1302
      %1339 = vst.msk [vmem:[%s170 + $0x50] sm:$0xff] %vm878, %v1307
      %1340 = vst.msk [vmem:[%s170 + $0x58] sm:$0xff] %vm878, %v1310
      %1341 = vst.msk [vmem:[%s170 + $0x60] sm:$0xff] %vm878, %v1315
      %1342 = vst.msk [vmem:[%s170 + $0x68] sm:$0xff] %vm878, %v1318
      %1343 = vst.msk [vmem:[%s170 + $0x70] sm:$0xff] %vm878, %v1323
      %1344 = vst.msk [vmem:[%s170 + $0x78] sm:$0xff] %vm878, %v1326
      %p1345 = scmp.lt.s32.totalorder %s14, 1
      %s1346 = scalar_select %p1345, %s14, 1
      %s1347 = smul.addr %s1346, 16
      %s1348 = smul.addr %s1347, 8
      %s1349 = scalar_lea.vmem %s3, %s1348
      // Predicated region
      $region33: #{tpu_custom_call.1} parent=31 // pred_check
        %p1350 = pneg %p100
      $region34: #{tpu_custom_call.1} parent=31 // pred_check_branch
        %1352 = sbr.rel (%p1350) target = $region36
      $region35: #{tpu_custom_call.1} parent=31 // pred_region
        _
      $region36: #{tpu_custom_call.1} parent=31 // pred_fallthru
        _
    $region32: #{tpu_custom_call.1} parent=5 // pred_fallthru
      _
    %p1353 = scmp.le.s32.totalorder 2, %s9
    // Predicated region
    $region37: #{tpu_custom_call.1} parent=5 // pred_check
      %p1354 = pneg %p1353
    $region38: #{tpu_custom_call.1} parent=5 // pred_check_branch
      %1356 = sbr.rel (%p1354) target = $region40
    $region39: #{tpu_custom_call.1} parent=5 // pred_region
      %s1357 = ssub.s32 %s9, 2
      // Predicated region
      $region41: #{tpu_custom_call.1} parent=39 // pred_check
        %p1358 = pneg %p106
      $region42: #{tpu_custom_call.1} parent=39 // pred_check_branch
        %1360 = sbr.rel (%p1358) target = $region44
      $region43: #{tpu_custom_call.1} parent=39 // pred_region
        %p1361 = scmp.lt.s32.totalorder %s15, 1
        %s1362 = scalar_select %p1361, %s15, 1
        %s1363 = smul.addr %s1362, 16
        %s1364 = smul.addr %s1363, 8
        %s1365 = scalar_lea.vmem %s3, %s1364
      $region44: #{tpu_custom_call.1} parent=39 // pred_fallthru
        _
    $region40: #{tpu_custom_call.1} parent=5 // pred_fallthru
      _
  $region6: #{tpu_custom_call.1} parent=0 // loop_footer
    %s13 = sadd.s32 1, %s9
  $region7: #{tpu_custom_call.1} parent=0 // loop_footer_branch
    %8 = sbr.rel target = $region3
  $region8: #{tpu_custom_call.1} parent=0 // loop_exit
    _

</llo_original>
